<compile_context>
chip_gen: v7x
topology: tpu7x:2x2x1
jax: 0.10.0
libtpu: 0.0.40
codegen_flags: <defaults>
</compile_context>

<pallas_src>
import functools

import jax
import jax.numpy as jnp
from jax.experimental import pallas as pl
from jax.experimental.pallas import tpu as pltpu


# ----------------------------------------------------------------------------
# in-kernel helpers
# ----------------------------------------------------------------------------
def _erf(x):
    # Exact-GELU path: lax.erf has no Mosaic lowering, so erf is computed with
    # the Abramowitz & Stegun 7.1.26 approximation (max abs err ~1.5e-7).
    p = 0.3275911
    a1, a2, a3, a4, a5 = (0.254829592, -0.284496736, 1.421413741,
                          -1.453152027, 1.061405429)
    sgn = jnp.where(x >= 0.0, 1.0, -1.0)
    ax = jnp.abs(x)
    t = 1.0 / (1.0 + p * ax)
    poly = ((((a5 * t + a4) * t + a3) * t + a2) * t + a1) * t
    return sgn * (1.0 - poly * jnp.exp(-ax * ax))


def _gelu(x, approximate):
    if approximate:
        # tanh-GELU: the transcendental runs in the (otherwise idle) EUP slot.
        c = 0.7978845608028654  # sqrt(2/pi)
        return 0.5 * x * (1.0 + jnp.tanh(c * (x + 0.044715 * x * x * x)))
    # exact GELU (parity with nn.GELU() up to ~1e-7)
    return 0.5 * x * (1.0 + _erf(x * 0.7071067811865475))


def _dot(a, b, matmul_dtype):
    if matmul_dtype is not None:
        a = a.astype(matmul_dtype)
        b = b.astype(matmul_dtype)
    return jnp.dot(a, b, preferred_element_type=jnp.float32)


# ----------------------------------------------------------------------------
# kernel: one (image, spatial-tile) block per grid step; S on lanes
# ----------------------------------------------------------------------------
def mlp_kernel(x_ref, w1_ref, b1_ref, w2_ref, b2_ref, o_ref, *,
               approximate_gelu, matmul_dtype):
    x = x_ref[...]                                       # (C, tS), S on lanes
    h = _dot(w1_ref[...], x, matmul_dtype) + b1_ref[...]  # fc1 -> (Hd, tS) f32
    h = _gelu(h, approximate_gelu)
    if matmul_dtype is not None:
        h = h.astype(matmul_dtype)                       # single down-cast
    y = _dot(w2_ref[...], h, matmul_dtype) + b2_ref[...]  # fc2 -> (C, tS) f32
    o_ref[...] = y.astype(o_ref.dtype)


# ----------------------------------------------------------------------------
# wrapper
# ----------------------------------------------------------------------------
def _vmem_budgets():
    """Generation-aware (activation_budget_bytes, vmem_limit_bytes)."""
    try:
        cap = int(pltpu.get_tpu_info().vmem_capacity_bytes)
    except Exception:  # conservative fallback (v7x: 64 MiB per TensorCore)
        cap = 64 << 20
    vmem_limit = min((cap * 3) // 4, 96 << 20)   # v7x ~48 MiB, v5e/v6e ~96 MiB
    budget = vmem_limit // 2                     # v7x ~24 MiB, v5e/v6e ~48 MiB
    return budget, vmem_limit


def _pick_spatial_tile(s_pad, c, hd, x_itemsize, budget_bytes, n):
    """Largest multiple-of-128 divisor of s_pad that fits the activation
    budget, while keeping >=2 total grid steps when possible."""
    # per-lane-column bytes: double-buffered x + out blocks (x dtype) plus the
    # f32 hidden intermediate (Hd rows) with 2x headroom for fusion temps.
    per_col = (2 * c * x_itemsize) * 2 + 2 * hd * 4
    n_units = s_pad // 128
    best = 128
    for k in range(1, n_units + 1):
        if n_units % k:
            continue
        ts = 128 * k
        if ts * per_col > budget_bytes:
            continue
        if n * (s_pad // ts) < 2 and s_pad >= 256:
            continue                      # keep both TensorCores busy at N=1
        best = ts
    return best


def swiftformer_mlp(x_nchw, params, *, batch_norm_eps=1e-5,
                    approximate_gelu=False, matmul_dtype=None):
    n, c, h, w = x_nchw.shape
    s = h * w
    hd = params["fc1_w"].shape[0]

    # Keep the activation dtype of the caller (no forced f32 HBM streams).
    x = x_nchw.reshape(n, c, s)
    if matmul_dtype is None and x.dtype == jnp.bfloat16:
        matmul_dtype = jnp.bfloat16       # bf16 MXU operands, f32 accumulation

    # Pad S to a multiple of 128 so every output store is lane-dense.
    s_pad = ((s + 127) // 128) * 128
    if s_pad != s:
        x = jnp.pad(x, ((0, 0), (0, 0), (0, s_pad - s)))

    # Fold eval-mode BatchNorm2d into fc1:  BN(x) = x*scale + shift
    #   fc1(BN(x)) = (W1*scale) @ x + (W1 @ shift + b1)
    bn_scale = params["bn_gamma"] / jnp.sqrt(params["bn_var"] + batch_norm_eps)
    bn_shift = params["bn_beta"] - params["bn_mean"] * bn_scale
    w1 = params["fc1_w"][:, :, 0, 0].astype(jnp.float32)        # (Hd, C)
    w1f = w1 * bn_scale[None, :]
    b1f = (w1 @ bn_shift + params["fc1_b"]).reshape(hd, 1).astype(jnp.float32)
    w2 = params["fc2_w"][:, :, 0, 0].astype(jnp.float32)        # (C, Hd)
    b2 = params["fc2_b"].reshape(c, 1).astype(jnp.float32)

    budget, vmem_limit = _vmem_budgets()
    ts = _pick_spatial_tile(s_pad, c, hd, jnp.dtype(x.dtype).itemsize,
                            budget, n)
    grid = (n, s_pad // ts)

    kernel = functools.partial(mlp_kernel, approximate_gelu=approximate_gelu,
                               matmul_dtype=matmul_dtype)

    def resident(shape):
        # Weights/biases: same block every step -> stay resident in VMEM.
        return pl.BlockSpec(shape, lambda nb, sb: (0, 0))

    out = pl.pallas_call(
        kernel,
        out_shape=jax.ShapeDtypeStruct((n, c, s_pad), x.dtype),
        grid=grid,
        in_specs=[
            pl.BlockSpec((None, c, ts), lambda nb, sb: (nb, 0, sb)),
            resident((hd, c)),
            resident((hd, 1)),
            resident((c, hd)),
            resident((c, 1)),
        ],
        out_specs=pl.BlockSpec((None, c, ts), lambda nb, sb: (nb, 0, sb)),
        compiler_params=pltpu.CompilerParams(
            dimension_semantics=("parallel", "parallel"),
            vmem_limit_bytes=int(vmem_limit)),
    )(x, w1f, b1f, w2, b2)

    if s_pad != s:
        out = out[:, :, :s]
    return out.reshape(n, c, h, w)


# ----------------------------------------------------------------------------
# pure-JAX reference (correctness check only)
# ----------------------------------------------------------------------------
def reference(x_nchw, params, *, batch_norm_eps=1e-5, approximate_gelu=False):
    x = x_nchw.astype(jnp.float32)
    g = params["bn_gamma"][None, :, None, None]
    bt = params["bn_beta"][None, :, None, None]
    m = params["bn_mean"][None, :, None, None]
    v = params["bn_var"][None, :, None, None]
    h = (x - m) / jnp.sqrt(v + batch_norm_eps) * g + bt
    h = (jnp.einsum("oi,nihw->nohw", params["fc1_w"][:, :, 0, 0], h)
         + params["fc1_b"][None, :, None, None])
    h = jax.nn.gelu(h, approximate=approximate_gelu)
    h = (jnp.einsum("oi,nihw->nohw", params["fc2_w"][:, :, 0, 0], h)
         + params["fc2_b"][None, :, None, None])
    return h


# ----------------------------------------------------------------------------
if __name__ == "__main__":
    # Small config: in_features=4, mlp_ratio=4 -> hidden=16, batch=2, 16x16.
    dim, mlp_ratio, N, H, W = 4, 4, 2, 16, 16
    hidden = int(mlp_ratio * dim)

    key = jax.random.PRNGKey(0)
    ks = jax.random.split(key, 11)
    params = {
        "bn_gamma": 1.0 + 0.1 * jax.random.normal(ks[0], (dim,), jnp.float32),
        "bn_beta": 0.1 * jax.random.normal(ks[1], (dim,), jnp.float32),
        "bn_mean": 0.1 * jax.random.normal(ks[2], (dim,), jnp.float32),
        "bn_var": jnp.abs(jax.random.normal(ks[3], (dim,), jnp.float32)) + 0.5,
        "fc1_w": 0.2 * jax.random.normal(ks[4], (hidden, dim, 1, 1), jnp.float32),
        "fc1_b": 0.1 * jax.random.normal(ks[5], (hidden,), jnp.float32),
        "fc2_w": 0.2 * jax.random.normal(ks[6], (dim, hidden, 1, 1), jnp.float32),
        "fc2_b": 0.1 * jax.random.normal(ks[7], (dim,), jnp.float32),
    }
    x = jax.random.normal(ks[8], (N, dim, H, W), jnp.float32)

    # 1) Default path: exact GELU, f32 streams (matches ACT2CLS["gelu"]).
    out = jax.block_until_ready(swiftformer_mlp(x, params))
    ref = reference(x, params, approximate_gelu=False)
    assert out.shape == ref.shape == (N, dim, H, W)
    assert jnp.allclose(out, ref, rtol=1e-4, atol=1e-4), (
        f"exact-gelu max abs err {jnp.max(jnp.abs(out - ref))}")

    # 2) EUP-friendly tanh-GELU fast path.
    out_t = jax.block_until_ready(swiftformer_mlp(x, params,
                                                  approximate_gelu=True))
    ref_t = reference(x, params, approximate_gelu=True)
    assert jnp.allclose(out_t, ref_t, rtol=1e-3, atol=1e-3), (
        f"tanh-gelu max abs err {jnp.max(jnp.abs(out_t - ref_t))}")

    # 3) bf16 activation streams + bf16 MXU operands (f32 accumulation).
    x_bf = x.astype(jnp.bfloat16)
    out_bf = jax.block_until_ready(swiftformer_mlp(x_bf, params))
    ref_bf = reference(x_bf.astype(jnp.float32), params,
                       approximate_gelu=False)
    assert out_bf.dtype == jnp.bfloat16
    assert jnp.allclose(out_bf.astype(jnp.float32), ref_bf,
                        rtol=3e-2, atol=3e-2), (
        f"bf16 max abs err {jnp.max(jnp.abs(out_bf.astype(jnp.float32) - ref_bf))}")

    print("KERNEL_OK")
</pallas_src>

<mosaic_0001>
module attributes {stable_mosaic.version = 11 : i64} {
  func.func @mlp_kernel(%arg0: i32, %arg1: i32, %arg2: memref<1x4x256xf32, #tpu.memory_space<vmem>>, %arg3: memref<16x4xf32, #tpu.memory_space<vmem>>, %arg4: memref<16x1xf32, #tpu.memory_space<vmem>>, %arg5: memref<4x16xf32, #tpu.memory_space<vmem>>, %arg6: memref<4x1xf32, #tpu.memory_space<vmem>>, %arg7: memref<1x4x256xf32, #tpu.memory_space<vmem>>) attributes {dimension_semantics = [#tpu.dimension_semantics<parallel>, #tpu.dimension_semantics<parallel>], iteration_bounds = array<i64: 2, 1>, scalar_prefetch = 0 : i64, scratch_operands = 0 : i64, tpu.core_type = #tpu.core_type<tc>, window_params = [{transform_indices = @transform_0, window_bounds = array<i64: 1, 4, 256>}, {pipeline_mode = #tpu.pipeline_mode<synchronous>, transform_indices = @transform_1, window_bounds = array<i64: 16, 4>}, {pipeline_mode = #tpu.pipeline_mode<synchronous>, transform_indices = @transform_2, window_bounds = array<i64: 16, 1>}, {pipeline_mode = #tpu.pipeline_mode<synchronous>, transform_indices = @transform_3, window_bounds = array<i64: 4, 16>}, {pipeline_mode = #tpu.pipeline_mode<synchronous>, transform_indices = @transform_4, window_bounds = array<i64: 4, 1>}, {transform_indices = @transform_5, window_bounds = array<i64: 1, 4, 256>}]} {
    %c0 = arith.constant 0 : index
    %c0_0 = arith.constant 0 : index
    %c0_1 = arith.constant 0 : index
    %0 = vector.load %arg2[%c0, %c0_0, %c0_1] : memref<1x4x256xf32, #tpu.memory_space<vmem>>, vector<1x4x256xf32>
    %1 = vector.shape_cast %0 : vector<1x4x256xf32> to vector<4x256xf32>
    %c0_2 = arith.constant 0 : index
    %c0_3 = arith.constant 0 : index
    %2 = vector.load %arg3[%c0_2, %c0_3] : memref<16x4xf32, #tpu.memory_space<vmem>>, vector<16x4xf32>
    %cst = arith.constant dense<0.000000e+00> : vector<16x256xf32>
    %3 = tpu.matmul %2, %1, %cst {dimension_numbers = #tpu.dot_dimension_numbers<[1], [0], [0], [1], [0, 0, 1, 1], [], []>} : vector<16x4xf32>, vector<4x256xf32>, vector<16x256xf32> -> vector<16x256xf32>
    %c0_4 = arith.constant 0 : index
    %c0_5 = arith.constant 0 : index
    %4 = vector.load %arg4[%c0_4, %c0_5] : memref<16x1xf32, #tpu.memory_space<vmem>>, vector<16x1xf32>
    %5 = vector.broadcast %4 : vector<16x1xf32> to vector<16x256xf32>
    %6 = arith.addf %3, %5 : vector<16x256xf32>
    %cst_6 = arith.constant 5.000000e-01 : f32
    %7 = vector.broadcast %cst_6 : f32 to vector<16x256xf32>
    %8 = arith.mulf %7, %6 : vector<16x256xf32>
    %cst_7 = arith.constant 0.707106769 : f32
    %9 = vector.broadcast %cst_7 : f32 to vector<16x256xf32>
    %10 = arith.mulf %6, %9 : vector<16x256xf32>
    %cst_8 = arith.constant 0.000000e+00 : f32
    %11 = vector.broadcast %cst_8 : f32 to vector<16x256xf32>
    %12 = arith.cmpf oge, %10, %11 : vector<16x256xf32>
    %cst_9 = arith.constant 1.000000e+00 : f32
    %cst_10 = arith.constant -1.000000e+00 : f32
    %13 = vector.broadcast %cst_9 : f32 to vector<16x256xf32>
    %14 = vector.broadcast %cst_10 : f32 to vector<16x256xf32>
    %15 = arith.select %12, %13, %14 : vector<16x256xi1>, vector<16x256xf32>
    %16 = math.absf %10 : vector<16x256xf32>
    %cst_11 = arith.constant 0.327591091 : f32
    %17 = vector.broadcast %cst_11 : f32 to vector<16x256xf32>
    %18 = arith.mulf %17, %16 : vector<16x256xf32>
    %cst_12 = arith.constant 1.000000e+00 : f32
    %19 = vector.broadcast %cst_12 : f32 to vector<16x256xf32>
    %20 = arith.addf %19, %18 : vector<16x256xf32>
    %cst_13 = arith.constant 1.000000e+00 : f32
    %21 = vector.broadcast %cst_13 : f32 to vector<16x256xf32>
    %22 = arith.divf %21, %20 : vector<16x256xf32>
    %cst_14 = arith.constant 1.06140542 : f32
    %23 = vector.broadcast %cst_14 : f32 to vector<16x256xf32>
    %24 = arith.mulf %23, %22 : vector<16x256xf32>
    %cst_15 = arith.constant -1.45315206 : f32
    %25 = vector.broadcast %cst_15 : f32 to vector<16x256xf32>
    %26 = arith.addf %24, %25 : vector<16x256xf32>
    %27 = arith.mulf %26, %22 : vector<16x256xf32>
    %cst_16 = arith.constant 1.42141378 : f32
    %28 = vector.broadcast %cst_16 : f32 to vector<16x256xf32>
    %29 = arith.addf %27, %28 : vector<16x256xf32>
    %30 = arith.mulf %29, %22 : vector<16x256xf32>
    %cst_17 = arith.constant -0.284496725 : f32
    %31 = vector.broadcast %cst_17 : f32 to vector<16x256xf32>
    %32 = arith.addf %30, %31 : vector<16x256xf32>
    %33 = arith.mulf %32, %22 : vector<16x256xf32>
    %cst_18 = arith.constant 0.254829586 : f32
    %34 = vector.broadcast %cst_18 : f32 to vector<16x256xf32>
    %35 = arith.addf %33, %34 : vector<16x256xf32>
    %36 = arith.mulf %35, %22 : vector<16x256xf32>
    %cst_19 = arith.constant 0.000000e+00 : f32
    %37 = vector.broadcast %cst_19 : f32 to vector<16x256xf32>
    %38 = arith.subf %37, %16 : vector<16x256xf32>
    %39 = arith.mulf %38, %16 : vector<16x256xf32>
    %40 = math.exp %39 : vector<16x256xf32>
    %41 = arith.mulf %36, %40 : vector<16x256xf32>
    %cst_20 = arith.constant 1.000000e+00 : f32
    %42 = vector.broadcast %cst_20 : f32 to vector<16x256xf32>
    %43 = arith.subf %42, %41 : vector<16x256xf32>
    %44 = arith.mulf %15, %43 : vector<16x256xf32>
    %cst_21 = arith.constant 1.000000e+00 : f32
    %45 = vector.broadcast %cst_21 : f32 to vector<16x256xf32>
    %46 = arith.addf %45, %44 : vector<16x256xf32>
    %47 = arith.mulf %8, %46 : vector<16x256xf32>
    %c0_22 = arith.constant 0 : index
    %c0_23 = arith.constant 0 : index
    %48 = vector.load %arg5[%c0_22, %c0_23] : memref<4x16xf32, #tpu.memory_space<vmem>>, vector<4x16xf32>
    %cst_24 = arith.constant dense<0.000000e+00> : vector<4x256xf32>
    %49 = tpu.matmul %48, %47, %cst_24 {dimension_numbers = #tpu.dot_dimension_numbers<[1], [0], [0], [1], [0, 0, 1, 1], [], []>} : vector<4x16xf32>, vector<16x256xf32>, vector<4x256xf32> -> vector<4x256xf32>
    %c0_25 = arith.constant 0 : index
    %c0_26 = arith.constant 0 : index
    %50 = vector.load %arg6[%c0_25, %c0_26] : memref<4x1xf32, #tpu.memory_space<vmem>>, vector<4x1xf32>
    %51 = vector.broadcast %50 : vector<4x1xf32> to vector<4x256xf32>
    %52 = arith.addf %49, %51 : vector<4x256xf32>
    %c0_27 = arith.constant 0 : index
    %c0_28 = arith.constant 0 : index
    %c0_29 = arith.constant 0 : index
    %53 = vector.load %arg7[%c0_27, %c0_28, %c0_29] : memref<1x4x256xf32, #tpu.memory_space<vmem>>, vector<1x4x256xf32>
    %54 = vector.shape_cast %53 : vector<1x4x256xf32> to vector<4x256xf32>
    %55 = vector.shape_cast %52 : vector<4x256xf32> to vector<1x4x256xf32>
    tpu.vector_store %arg7[%c0_27, %c0_28, %c0_29], %55 {strides = array<i32>} : memref<1x4x256xf32, #tpu.memory_space<vmem>>, vector<1x4x256xf32>,
    return
  }
  func.func @transform_0(%arg0: i32, %arg1: i32) -> (i32, i32, i32) {
    %c0_i32 = arith.constant 0 : i32
    %c0_i32_0 = arith.constant 0 : i32
    return %arg0, %c0_i32, %arg1 : i32, i32, i32
  }
  func.func @transform_1(%arg0: i32, %arg1: i32) -> (i32, i32) {
    %c0_i32 = arith.constant 0 : i32
    %c0_i32_0 = arith.constant 0 : i32
    %c0_i32_1 = arith.constant 0 : i32
    return %c0_i32, %c0_i32_0 : i32, i32
  }
  func.func @transform_2(%arg0: i32, %arg1: i32) -> (i32, i32) {
    %c0_i32 = arith.constant 0 : i32
    %c0_i32_0 = arith.constant 0 : i32
    %c0_i32_1 = arith.constant 0 : i32
    return %c0_i32, %c0_i32_0 : i32, i32
  }
  func.func @transform_3(%arg0: i32, %arg1: i32) -> (i32, i32) {
    %c0_i32 = arith.constant 0 : i32
    %c0_i32_0 = arith.constant 0 : i32
    %c0_i32_1 = arith.constant 0 : i32
    return %c0_i32, %c0_i32_0 : i32, i32
  }
  func.func @transform_4(%arg0: i32, %arg1: i32) -> (i32, i32) {
    %c0_i32 = arith.constant 0 : i32
    %c0_i32_0 = arith.constant 0 : i32
    %c0_i32_1 = arith.constant 0 : i32
    return %c0_i32, %c0_i32_0 : i32, i32
  }
  func.func @transform_5(%arg0: i32, %arg1: i32) -> (i32, i32, i32) {
    %c0_i32 = arith.constant 0 : i32
    %c0_i32_0 = arith.constant 0 : i32
    return %arg0, %c0_i32, %arg1 : i32, i32, i32
  }
}

</mosaic_0001>

<llo_original>
// kernel: tpu_custom_call.1
$region0: #{tpu_custom_call.1}
  #allocation0 [shape = 'u32[]', space=smem, size = 0x4, offset = 0x4, fixed_abs, tag = 'smem constant byte address 0x4 - core index']
  #allocation1 [shape = 'u32[144,128]{1,0:T(1,128)}', space=vmem, size = 0x12000, scoped, tag = 'internal scratch']
  %s0 = inlined_call_operand.vmem [shape: f32[2,4,256], index: 0, kind: input, shape index: {}]
  %s1 = inlined_call_operand.vmem [shape: f32[16,4], index: 1, kind: input, shape index: {}]
  %s2 = inlined_call_operand.vmem [shape: f32[16,1], index: 2, kind: input, shape index: {}]
  %s3 = inlined_call_operand.vmem [shape: f32[4,16], index: 3, kind: input, shape index: {}]
  %s4 = inlined_call_operand.vmem [shape: f32[4,1], index: 4, kind: input, shape index: {}]
  %s5 = inlined_call_operand.hbm [shape: f32[2,4,256], index: 5, kind: output, shape index: {}]
  %s6 = sld [smem:[#allocation0]]
  $region53: #{tpu_custom_call.1} parent=0
    _
  %s8 = ssub.s32 1, %s6
  %s9 = scalar_select 0, %s8, %s6
  $region1: #{tpu_custom_call.1} parent=0
    #allocation2 [shape = 'u8[8192]{0}', space=vmem, size = 0x2000, scoped, tag = 'output window, operand 0']
    #allocation3 [shape = 's32[2]{0}', space=sflag, size = 0x8, scoped, tag = 'scoped memory for tpu_custom_call.1']
    %10 = vsyncpa [#allocation3], 0
    %s11 = scalar_lea.sflag [#allocation3], 1
    %12 = vsyncpa %s11, 0
    loop: start=0, step=1, limit=4
    $region2: #{tpu_custom_call.1} parent=1 // loop_pre_header
      _
    $region3: #{tpu_custom_call.1} parent=1 // loop_header
      %s14 = sphi 0, %s18
      %p15 = scmp.ge.s32.totalorder %s14, 4
      %s21 = sphi 0, %s33
      %s22 = sphi 0, %s29
      %s23 = sphi 0, %s21
      %s24 = sphi 0, %s22
      %s25 = sphi 0, %s23
      %s26 = sphi 0, %s24
      %s38 = sphi 0, %s40
      %s41 = sphi 0, %s38
      %s42 = sphi 0, %s41
      %s58 = sphi 0, %s42
      %s62 = sphi 0, %s62
      %s64 = sphi 0, %s62
      %s65 = sphi 0, %s64
      %s79 = sphi 0, %s65
      %s83 = sphi 0, %s83
      %s85 = sphi 0, %s83
      %s86 = sphi 0, %s85
      %s100 = sphi 0, %s86
      %s104 = sphi 0, %s104
      %s106 = sphi 0, %s104
      %s107 = sphi 0, %s106
      %s121 = sphi 0, %s107
      %s125 = sphi 0, %s125
      %s127 = sphi 0, %s125
      %s128 = sphi 0, %s127
      %s142 = sphi 0, %s128
      %s150 = sphi 0, %s152
      %s153 = sphi 0, %s150
      %s154 = sphi 0, %s153
      %s170 = sphi 0, %s154
    $region4: #{tpu_custom_call.1} parent=1 // loop_header_branch
      %17 = sbr.rel (%p15) target = $region8
    $region5: #{tpu_custom_call.1} parent=1 // loop_body
      %s19 = ssub.s32 %s14, 1
      %s20 = ssub.s32 %s14, 2
      %s27 = sadd.s32 1, %s22
      %p28 = scmp.ge.s32.totalorder %s27, 1
      %s29 = scalar_select %p28, 0, %s27
      %s30 = sadd.s32 1, %s21
      %s31 = scalar_select %p28, %s30, %s21
      %p32 = scmp.ge.s32.totalorder %s31, 2
      %s33 = scalar_select %p32, 0, %s31
      %s34 = ssub.s32 %s21, %s33
      %s35 = ssub.s32 %s22, %s29
      %s36 = sor.u32 %s34, %s35
      %p37 = scmp.eq.s32.totalorder %s36, 0
      %s39 = sadd.s32 %s38, 1
      %s40 = scalar_select %p37, %s38, %s39
      %p43 = pneg %p37
      %p44 = scmp.eq.s32.totalorder %s14, 1
      %p45 = por %p43, %p44
      %p46 = scmp.ne.s32.totalorder %s38, %s41
      %p47 = scmp.eq.s32.totalorder %s14, 0
      %p48 = por %p46, %p47
      %p49 = scmp.ne.s32.totalorder %s38, %s41
      %p50 = scmp.eq.s32.totalorder %s19, 1
      %p51 = por %p49, %p50
      %p52 = scmp.ne.s32.totalorder %s41, %s42
      %p53 = scmp.eq.s32.totalorder %s19, 0
      %p54 = por %p52, %p53
      %p55 = scmp.ne.s32.totalorder %s41, %s42
      %p56 = scmp.eq.s32.totalorder %s20, 1
      %p57 = por %p55, %p56
      %p59 = scmp.ne.s32.totalorder %s42, %s58
      %p60 = scmp.eq.s32.totalorder %s20, 0
      %p61 = por %p59, %p60
      %s63 = sadd.s32 %s62, 1
      %p66 = scmp.eq.s32.totalorder %s14, 1
      %p67 = scmp.ne.s32.totalorder %s62, %s64
      %p68 = scmp.eq.s32.totalorder %s14, 0
      %p69 = por %p67, %p68
      %p70 = scmp.ne.s32.totalorder %s62, %s64
      %p71 = scmp.eq.s32.totalorder %s19, 1
      %p72 = por %p70, %p71
      %p73 = scmp.ne.s32.totalorder %s64, %s65
      %p74 = scmp.eq.s32.totalorder %s19, 0
      %p75 = por %p73, %p74
      %p76 = scmp.ne.s32.totalorder %s64, %s65
      %p77 = scmp.eq.s32.totalorder %s20, 1
      %p78 = por %p76, %p77
      %p80 = scmp.ne.s32.totalorder %s65, %s79
      %p81 = scmp.eq.s32.totalorder %s20, 0
      %p82 = por %p80, %p81
      %s84 = sadd.s32 %s83, 1
      %p87 = scmp.eq.s32.totalorder %s14, 1
      %p88 = scmp.ne.s32.totalorder %s83, %s85
      %p89 = scmp.eq.s32.totalorder %s14, 0
      %p90 = por %p88, %p89
      %p91 = scmp.ne.s32.totalorder %s83, %s85
      %p92 = scmp.eq.s32.totalorder %s19, 1
      %p93 = por %p91, %p92
      %p94 = scmp.ne.s32.totalorder %s85, %s86
      %p95 = scmp.eq.s32.totalorder %s19, 0
      %p96 = por %p94, %p95
      %p97 = scmp.ne.s32.totalorder %s85, %s86
      %p98 = scmp.eq.s32.totalorder %s20, 1
      %p99 = por %p97, %p98
      %p101 = scmp.ne.s32.totalorder %s86, %s100
      %p102 = scmp.eq.s32.totalorder %s20, 0
      %p103 = por %p101, %p102
      %s105 = sadd.s32 %s104, 1
      %p108 = scmp.eq.s32.totalorder %s14, 1
      %p109 = scmp.ne.s32.totalorder %s104, %s106
      %p110 = scmp.eq.s32.totalorder %s14, 0
      %p111 = por %p109, %p110
      %p112 = scmp.ne.s32.totalorder %s104, %s106
      %p113 = scmp.eq.s32.totalorder %s19, 1
      %p114 = por %p112, %p113
      %p115 = scmp.ne.s32.totalorder %s106, %s107
      %p116 = scmp.eq.s32.totalorder %s19, 0
      %p117 = por %p115, %p116
      %p118 = scmp.ne.s32.totalorder %s106, %s107
      %p119 = scmp.eq.s32.totalorder %s20, 1
      %p120 = por %p118, %p119
      %p122 = scmp.ne.s32.totalorder %s107, %s121
      %p123 = scmp.eq.s32.totalorder %s20, 0
      %p124 = por %p122, %p123
      %s126 = sadd.s32 %s125, 1
      %p129 = scmp.eq.s32.totalorder %s14, 1
      %p130 = scmp.ne.s32.totalorder %s125, %s127
      %p131 = scmp.eq.s32.totalorder %s14, 0
      %p132 = por %p130, %p131
      %p133 = scmp.ne.s32.totalorder %s125, %s127
      %p134 = scmp.eq.s32.totalorder %s19, 1
      %p135 = por %p133, %p134
      %p136 = scmp.ne.s32.totalorder %s127, %s128
      %p137 = scmp.eq.s32.totalorder %s19, 0
      %p138 = por %p136, %p137
      %p139 = scmp.ne.s32.totalorder %s127, %s128
      %p140 = scmp.eq.s32.totalorder %s20, 1
      %p141 = por %p139, %p140
      %p143 = scmp.ne.s32.totalorder %s128, %s142
      %p144 = scmp.eq.s32.totalorder %s20, 0
      %p145 = por %p143, %p144
      %s146 = ssub.s32 %s21, %s33
      %s147 = ssub.s32 %s22, %s29
      %s148 = sor.u32 %s146, %s147
      %p149 = scmp.eq.s32.totalorder %s148, 0
      %s151 = sadd.s32 %s150, 1
      %s152 = scalar_select %p149, %s150, %s151
      %p155 = pneg %p149
      %p156 = scmp.eq.s32.totalorder %s14, 1
      %p157 = por %p155, %p156
      %p158 = scmp.ne.s32.totalorder %s150, %s153
      %p159 = scmp.eq.s32.totalorder %s14, 0
      %p160 = por %p158, %p159
      %p161 = scmp.ne.s32.totalorder %s150, %s153
      %p162 = scmp.eq.s32.totalorder %s19, 1
      %p163 = por %p161, %p162
      %p164 = scmp.ne.s32.totalorder %s153, %s154
      %p165 = scmp.eq.s32.totalorder %s19, 0
      %p166 = por %p164, %p165
      %p167 = scmp.ne.s32.totalorder %s153, %s154
      %p168 = scmp.eq.s32.totalorder %s20, 1
      %p169 = por %p167, %p168
      %p171 = scmp.ne.s32.totalorder %s154, %s170
      %p172 = scmp.eq.s32.totalorder %s20, 0
      %p173 = por %p171, %p172
      %p174 = scmp.le.s32.totalorder 1, %s14
      %p175 = scmp.lt.s32.totalorder %s14, 3
      %p176 = pnand %p174, %p175
      %p177 = pneg %p176
      // Predicated region
      $region9: #{tpu_custom_call.1} parent=5 // pred_check
        _
      $region10: #{tpu_custom_call.1} parent=5 // pred_check_branch
        %179 = sbr.rel (%p176) target = $region12
      $region11: #{tpu_custom_call.1} parent=5 // pred_region
        %s180 = ssub.s32 %s14, 1
        // Predicated region
        $region13: #{tpu_custom_call.1} parent=11 // pred_check
          %p181 = pneg %p75
        $region14: #{tpu_custom_call.1} parent=11 // pred_check_branch
          %183 = sbr.rel (%p181) target = $region16
        $region15: #{tpu_custom_call.1} parent=11 // pred_region
          _
        $region16: #{tpu_custom_call.1} parent=11 // pred_fallthru
          _
        // Predicated region
        $region17: #{tpu_custom_call.1} parent=11 // pred_check
          %p184 = pneg %p96
        $region18: #{tpu_custom_call.1} parent=11 // pred_check_branch
          %186 = sbr.rel (%p184) target = $region20
        $region19: #{tpu_custom_call.1} parent=11 // pred_region
          _
        $region20: #{tpu_custom_call.1} parent=11 // pred_fallthru
          _
        // Predicated region
        $region21: #{tpu_custom_call.1} parent=11 // pred_check
          %p187 = pneg %p117
        $region22: #{tpu_custom_call.1} parent=11 // pred_check_branch
          %189 = sbr.rel (%p187) target = $region24
        $region23: #{tpu_custom_call.1} parent=11 // pred_region
          _
        $region24: #{tpu_custom_call.1} parent=11 // pred_fallthru
          _
        // Predicated region
        $region25: #{tpu_custom_call.1} parent=11 // pred_check
          %p190 = pneg %p138
        $region26: #{tpu_custom_call.1} parent=11 // pred_check_branch
          %192 = sbr.rel (%p190) target = $region28
        $region27: #{tpu_custom_call.1} parent=11 // pred_region
          _
        $region28: #{tpu_custom_call.1} parent=11 // pred_fallthru
          _
      $region12: #{tpu_custom_call.1} parent=5 // pred_fallthru
        _
      %p193 = scmp.lt.s32.totalorder %s14, 2
      // Predicated region
      $region29: #{tpu_custom_call.1} parent=5 // pred_check
        %p194 = pneg %p193
      $region30: #{tpu_custom_call.1} parent=5 // pred_check_branch
        %196 = sbr.rel (%p194) target = $region32
      $region31: #{tpu_custom_call.1} parent=5 // pred_region
        // Predicated region
        $region33: #{tpu_custom_call.1} parent=31 // pred_check
          %p197 = pneg %p48
        $region34: #{tpu_custom_call.1} parent=31 // pred_check_branch
          %199 = sbr.rel (%p197) target = $region36
        $region35: #{tpu_custom_call.1} parent=31 // pred_region
          %s200 = smul.u32 2, %s22
          %p201 = scmp.lt.s32.totalorder %s21, 1
          %s202 = scalar_select %p201, %s21, 1
          %p203 = scmp.lt.s32.totalorder %s200, 1
          %s204 = scalar_select %p203, %s200, 1
          %s205 = smul.addr %s202, 2
          %s206 = sadd.s32 %s204, %s205
          %s207 = smul.addr %s206, 4
          %s208 = scalar_lea.vmem %s0, %s207
          %s209 = smul.u32 2, %s22
        $region36: #{tpu_custom_call.1} parent=31 // pred_fallthru
          _
      $region32: #{tpu_custom_call.1} parent=5 // pred_fallthru
        _
      %p210 = scmp.le.s32.totalorder 1, %s14
      %p211 = scmp.lt.s32.totalorder %s14, 3
      %p212 = pnand %p210, %p211
      %p213 = pneg %p212
      // Predicated region
      $region37: #{tpu_custom_call.1} parent=5 // pred_check
        _
      $region38: #{tpu_custom_call.1} parent=5 // pred_check_branch
        %215 = sbr.rel (%p212) target = $region40
      $region39: #{tpu_custom_call.1} parent=5 // pred_region
        %s216 = ssub.s32 %s14, 1
        %s217 = smul.u32 2, %s24
        %p218 = scmp.lt.s32.totalorder %s23, 1
        %s219 = scalar_select %p218, %s23, 1
        %p220 = scmp.lt.s32.totalorder %s217, 1
        %s221 = scalar_select %p220, %s217, 1
        %s222 = smul.addr %s219, 2
        %s223 = sadd.s32 %s221, %s222
        %s224 = smul.addr %s223, 4
        %s225 = scalar_lea.vmem %s0, %s224
        %p226 = pneg %p54
        %p227 = pneg %p51
        %p228 = pneg %p75
        %p229 = pneg %p72
        %p230 = pneg %p96
        %p231 = pneg %p93
        %p232 = pneg %p117
        %p233 = pneg %p114
        %p234 = pneg %p138
        %p235 = pneg %p135
        %p236 = pneg %p166
        %p237 = pneg %p163
        %s238 = sand.u32 %s153, 1
        %s239 = scalar_lea.sflag [#allocation3], %s238
        %s240 = sand.u32 %s153, 1
        %s241 = smul.addr %s240, 8
        %s242 = scalar_lea.vmem [#allocation2], %s241
        %s243 = smul.u32 2, %s24
        %p244 = scmp.lt.s32.totalorder %s23, 1
        %s245 = scalar_select %p244, %s23, 1
        %p246 = scmp.lt.s32.totalorder %s243, 1
        %s247 = scalar_select %p246, %s243, 1
        %s248 = smul.addr %s245, 2
        %s249 = sadd.s32 %s247, %s248
        %s250 = smul.addr %s249, 4
        %s251 = scalar_lea.vmem %s0, %s250
        %s252 = smul.u32 2, %s24
        %s253 = smul.u32 2, %s24
        %v254 = vld [vmem:[%s251] sm:$0xff]
        %v255 = vld [vmem:[%s1] sm:$0xff]
        %v256 = vld [vmem:[%s1 + $0x8] sm:$0xff]
        %v257 = vld [vmem:[%s2] sm:$0xff]
        %v258 = vld [vmem:[%s2 + $0x8] sm:$0xff]
        %260 = vset.pattern.permute.xlu0 0
        %261 = vperm.xlu0 %260, %v257
        %v262 = vpop.permute.xlu0 %261
        %265 = vset.pattern.permute.xlu0 0
        %266 = vperm.xlu0 %265, %v258
        %v267 = vpop.permute.xlu0 %266
        %v270 = vcombine.high %v254, %v254
        %vm271 = vcmask 31744
        %v273 = vsel %vm271, %v255, 0
        %v276 = vsel %vm271, %v256, 0
        %vm278 = vcmask 1043456
        %v279 = vsel %vm278, %v254, 0
        %v281 = vsel %vm278, %v270, 0
        %283 = vmatprep.subr.mxu0 %v281
        %284 = vmatpush1.msra.mxu0 %v279
        %285 = vmatprep.subr.mxu0 0.0
        %286 = vmatpush1.msra.mxu0 0.0
        %287 = vmatprep.subr.mxu0 0.0
        %288 = vmatpush1.msra.mxu0 0.0
        %289 = vmatprep.subr.mxu0 0.0
        %290 = vmatpush1.msra.mxu0 0.0
        %291 = vmatprep.subr.mxu0 0.0
        %292 = vmatpush1.msra.mxu0 0.0
        %293 = vmatprep.subr.mxu0 0.0
        %294 = vmatpush1.msra.mxu0 0.0
        %295 = vmatprep.subr.mxu0 0.0
        %296 = vmatpush1.msra.mxu0 0.0
        %297 = vmatprep.subr.mxu0 0.0
        %298 = vmatpush1.msra.mxu0 0.0
        %299 = vmatprep.subr.mxu0 0.0
        %300 = vmatpush1.msra.mxu0 0.0
        %301 = vmatprep.subr.mxu0 0.0
        %302 = vmatpush1.msra.mxu0 0.0
        %303 = vmatprep.subr.mxu0 0.0
        %304 = vmatpush1.msra.mxu0 0.0
        %305 = vmatprep.subr.mxu0 0.0
        %306 = vmatpush1.msra.mxu0 0.0
        %307 = vmatprep.subr.mxu0 0.0
        %308 = vmatpush1.msra.mxu0 0.0
        %309 = vmatprep.subr.mxu0 0.0
        %310 = vmatpush1.msra.mxu0 0.0
        %311 = vmatprep.subr.mxu0 0.0
        %312 = vmatpush1.msra.mxu0 0.0
        %313 = vmatprep.subr.mxu0 0.0
        %314 = vmatpush1.msra.mxu0 0.0
        %315 = vmatprep.subr.mxu0 0.0
        %316 = vmatpush1.msra.mxu0 0.0
        %317 = vmatprep.subr.mxu0 0.0
        %318 = vmatpush1.msra.mxu0 0.0
        %319 = vmatprep.subr.mxu0 0.0
        %320 = vmatpush1.msra.mxu0 0.0
        %321 = vmatprep.subr.mxu0 0.0
        %322 = vmatpush1.msra.mxu0 0.0
        %323 = vmatprep.subr.mxu0 0.0
        %324 = vmatpush1.msra.mxu0 0.0
        %325 = vmatprep.subr.mxu0 0.0
        %326 = vmatpush1.msra.mxu0 0.0
        %327 = vmatprep.subr.mxu0 0.0
        %328 = vmatpush1.msra.mxu0 0.0
        %329 = vmatprep.subr.mxu0 0.0
        %330 = vmatpush1.msra.mxu0 0.0
        %331 = vmatprep.subr.mxu0 0.0
        %332 = vmatpush1.msra.mxu0 0.0
        %333 = vmatprep.subr.mxu0 0.0
        %334 = vmatpush1.msra.mxu0 0.0
        %335 = vmatprep.subr.mxu0 0.0
        %336 = vmatpush1.msra.mxu0 0.0
        %337 = vmatprep.subr.mxu0 0.0
        %338 = vmatpush1.msra.mxu0 0.0
        %339 = vmatprep.subr.mxu0 0.0
        %340 = vmatpush1.msra.mxu0 0.0
        %341 = vmatprep.subr.mxu0 0.0
        %342 = vmatpush1.msra.mxu0 0.0
        %343 = vmatprep.subr.mxu0 0.0
        %344 = vmatpush1.msra.mxu0 0.0
        %345 = vmatprep.subr.mxu0 0.0
        %346 = vmatpush1.msra.mxu0 0.0
        %347 = vmatprep.mubr.f32.mxu0 0.0
        %348 = vmatmul.mubr.f32.gmra.mrb[0].mxu0 %v273
        %v349 = vpop.f32.mrb[0].mxu0
        %v350 = vadd.f32 %v262, %v349
        %v351 = vpop.f32.mrb[0].mxu0
        %v352 = vadd.f32 %v262, %v351
        %353 = vmatprep.mubr.f32.mxu0 0.0
        %354 = vmatmul.mubr.f32.gmra.mrb[0].mxu0 %v276
        %v355 = vpop.f32.mrb[0].mxu0
        %v356 = vadd.f32 %v267, %v355
        %v357 = vpop.f32.mrb[0].mxu0
        %v358 = vadd.f32 %v267, %v357
        %359 = vdwg.mxu0
        %v360 = vmul.f32 %v350, 0.5
        %v361 = vmul.f32 %v352, 0.5
        %v362 = vmul.f32 %v356, 0.5
        %v363 = vmul.f32 %v358, 0.5
        %v364 = vmul.f32 %v350, 0.70710677
        %v365 = vmul.f32 %v352, 0.70710677
        %v366 = vmul.f32 %v356, 0.70710677
        %v367 = vmul.f32 %v358, 0.70710677
        %vm368 = vcmp.ge.f32.partialorder %v364, 0.0
        %vm369 = vcmp.ge.f32.partialorder %v365, 0.0
        %vm370 = vcmp.ge.f32.partialorder %v366, 0.0
        %vm371 = vcmp.ge.f32.partialorder %v367, 0.0
        %v372 = vsel %vm368, 1.0, -1.0
        %v373 = vsel %vm369, 1.0, -1.0
        %v374 = vsel %vm370, 1.0, -1.0
        %v375 = vsel %vm371, 1.0, -1.0
        %v376 = vand.u32 2147483647, %v364
        %v377 = vand.u32 2147483647, %v365
        %v378 = vand.u32 2147483647, %v366
        %v379 = vand.u32 2147483647, %v367
        %v380 = vmul.f32 %v376, 0.3275911
        %v381 = vmul.f32 %v377, 0.3275911
        %v382 = vmul.f32 %v378, 0.3275911
        %v383 = vmul.f32 %v379, 0.3275911
        %v384 = vadd.f32 %v380, 1.0
        %v385 = vadd.f32 %v381, 1.0
        %v386 = vadd.f32 %v382, 1.0
        %v387 = vadd.f32 %v383, 1.0
        %v388 = vrcp.pop %v384
        %v389 = vmul.f32 1.0, %v388
        %v390 = vrcp.pop %v385
        %v391 = vmul.f32 1.0, %v390
        %v392 = vrcp.pop %v386
        %v393 = vmul.f32 1.0, %v392
        %v394 = vrcp.pop %v387
        %v395 = vmul.f32 1.0, %v394
        %v396 = vmul.f32 %v389, 1.0614054
        %v397 = vmul.f32 %v391, 1.0614054
        %v398 = vmul.f32 %v393, 1.0614054
        %v399 = vmul.f32 %v395, 1.0614054
        %v400 = vadd.f32 %v396, -1.4531521
        %v401 = vadd.f32 %v397, -1.4531521
        %v402 = vadd.f32 %v398, -1.4531521
        %v403 = vadd.f32 %v399, -1.4531521
        %v404 = vmul.f32 %v400, %v389
        %v405 = vmul.f32 %v401, %v391
        %v406 = vmul.f32 %v402, %v393
        %v407 = vmul.f32 %v403, %v395
        %v408 = vadd.f32 %v404, 1.4214138
        %v409 = vadd.f32 %v405, 1.4214138
        %v410 = vadd.f32 %v406, 1.4214138
        %v411 = vadd.f32 %v407, 1.4214138
        %v412 = vmul.f32 %v408, %v389
        %v413 = vmul.f32 %v409, %v391
        %v414 = vmul.f32 %v410, %v393
        %v415 = vmul.f32 %v411, %v395
        %v416 = vadd.f32 %v412, -0.28449672
        %v417 = vadd.f32 %v413, -0.28449672
        %v418 = vadd.f32 %v414, -0.28449672
        %v419 = vadd.f32 %v415, -0.28449672
        %v420 = vmul.f32 %v416, %v389
        %v421 = vmul.f32 %v417, %v391
        %v422 = vmul.f32 %v418, %v393
        %v423 = vmul.f32 %v419, %v395
        %v424 = vadd.f32 %v420, 0.2548296
        %v425 = vadd.f32 %v421, 0.2548296
        %v426 = vadd.f32 %v422, 0.2548296
        %v427 = vadd.f32 %v423, 0.2548296
        %v428 = vmul.f32 %v424, %v389
        %v429 = vmul.f32 %v425, %v391
        %v430 = vmul.f32 %v426, %v393
        %v431 = vmul.f32 %v427, %v395
        %v432 = vsub.f32 0.0, %v376
        %v433 = vsub.f32 0.0, %v377
        %v434 = vsub.f32 0.0, %v378
        %v435 = vsub.f32 0.0, %v379
        %v436 = vmul.f32 %v432, %v376
        %v437 = vmul.f32 %v433, %v377
        %v438 = vmul.f32 %v434, %v378
        %v439 = vmul.f32 %v435, %v379
        %v440 = vmul.f32 %v436, 1.442695
        %v441 = vpow.pop %v440
        %v442 = vmul.f32 %v437, 1.442695
        %v443 = vpow.pop %v442
        %v444 = vmul.f32 %v438, 1.442695
        %v445 = vpow.pop %v444
        %v446 = vmul.f32 %v439, 1.442695
        %v447 = vpow.pop %v446
        %v448 = vmul.f32 %v428, %v441
        %v449 = vmul.f32 %v429, %v443
        %v450 = vmul.f32 %v430, %v445
        %v451 = vmul.f32 %v431, %v447
        %v452 = vsub.f32 1.0, %v448
        %v453 = vsub.f32 1.0, %v449
        %v454 = vsub.f32 1.0, %v450
        %v455 = vsub.f32 1.0, %v451
        %v456 = vmul.f32 %v372, %v452
        %v457 = vmul.f32 %v373, %v453
        %v458 = vmul.f32 %v374, %v454
        %v459 = vmul.f32 %v375, %v455
        %v460 = vadd.f32 %v456, 1.0
        %v461 = vadd.f32 %v457, 1.0
        %v462 = vadd.f32 %v458, 1.0
        %v463 = vadd.f32 %v459, 1.0
        %v464 = vmul.f32 %v360, %v460
        %v465 = vmul.f32 %v361, %v461
        %v466 = vmul.f32 %v362, %v462
        %v467 = vmul.f32 %v363, %v463
        %v468 = vld [vmem:[%s3] sm:$0xf]
        %v469 = vld [vmem:[%s4] sm:$0xf]
        %471 = vset.pattern.permute.xlu0 0
        %472 = vperm.xlu0 %471, %v469
        %v473 = vpop.permute.xlu0 %472
        %vm475 = vcmask 130048
        %v477 = vsel %vm475, %v468, 0
        %479 = vmatprep.subr.mxu0 %v465
        %480 = vmatpush1.msra.mxu0 %v464
        %481 = vmatprep.subr.mxu0 %v467
        %482 = vmatpush1.msra.mxu0 %v466
        %483 = vmatprep.subr.mxu0 0.0
        %484 = vmatpush1.msra.mxu0 0.0
        %485 = vmatprep.subr.mxu0 0.0
        %486 = vmatpush1.msra.mxu0 0.0
        %487 = vmatprep.subr.mxu0 0.0
        %488 = vmatpush1.msra.mxu0 0.0
        %489 = vmatprep.subr.mxu0 0.0
        %490 = vmatpush1.msra.mxu0 0.0
        %491 = vmatprep.subr.mxu0 0.0
        %492 = vmatpush1.msra.mxu0 0.0
        %493 = vmatprep.subr.mxu0 0.0
        %494 = vmatpush1.msra.mxu0 0.0
        %495 = vmatprep.subr.mxu0 0.0
        %496 = vmatpush1.msra.mxu0 0.0
        %497 = vmatprep.subr.mxu0 0.0
        %498 = vmatpush1.msra.mxu0 0.0
        %499 = vmatprep.subr.mxu0 0.0
        %500 = vmatpush1.msra.mxu0 0.0
        %501 = vmatprep.subr.mxu0 0.0
        %502 = vmatpush1.msra.mxu0 0.0
        %503 = vmatprep.subr.mxu0 0.0
        %504 = vmatpush1.msra.mxu0 0.0
        %505 = vmatprep.subr.mxu0 0.0
        %506 = vmatpush1.msra.mxu0 0.0
        %507 = vmatprep.subr.mxu0 0.0
        %508 = vmatpush1.msra.mxu0 0.0
        %509 = vmatprep.subr.mxu0 0.0
        %510 = vmatpush1.msra.mxu0 0.0
        %511 = vmatprep.subr.mxu0 0.0
        %512 = vmatpush1.msra.mxu0 0.0
        %513 = vmatprep.subr.mxu0 0.0
        %514 = vmatpush1.msra.mxu0 0.0
        %515 = vmatprep.subr.mxu0 0.0
        %516 = vmatpush1.msra.mxu0 0.0
        %517 = vmatprep.subr.mxu0 0.0
        %518 = vmatpush1.msra.mxu0 0.0
        %519 = vmatprep.subr.mxu0 0.0
        %520 = vmatpush1.msra.mxu0 0.0
        %521 = vmatprep.subr.mxu0 0.0
        %522 = vmatpush1.msra.mxu0 0.0
        %523 = vmatprep.subr.mxu0 0.0
        %524 = vmatpush1.msra.mxu0 0.0
        %525 = vmatprep.subr.mxu0 0.0
        %526 = vmatpush1.msra.mxu0 0.0
        %527 = vmatprep.subr.mxu0 0.0
        %528 = vmatpush1.msra.mxu0 0.0
        %529 = vmatprep.subr.mxu0 0.0
        %530 = vmatpush1.msra.mxu0 0.0
        %531 = vmatprep.subr.mxu0 0.0
        %532 = vmatpush1.msra.mxu0 0.0
        %533 = vmatprep.subr.mxu0 0.0
        %534 = vmatpush1.msra.mxu0 0.0
        %535 = vmatprep.subr.mxu0 0.0
        %536 = vmatpush1.msra.mxu0 0.0
        %537 = vmatprep.subr.mxu0 0.0
        %538 = vmatpush1.msra.mxu0 0.0
        %539 = vmatprep.subr.mxu0 0.0
        %540 = vmatpush1.msra.mxu0 0.0
        %541 = vmatprep.subr.mxu0 0.0
        %542 = vmatpush1.msra.mxu0 0.0
        %543 = vmatprep.mubr.f32.mxu0 0.0
        %544 = vmatmul.mubr.f32.gmra.mrb[0].mxu0 %v477
        %v545 = vpop.f32.mrb[0].mxu0
        %v546 = vadd.f32 %v473, %v545
        %v547 = vpop.f32.mrb[0].mxu0
        %v548 = vadd.f32 %v473, %v547
        %549 = vdwg.mxu0
        %v552 = vcombine.low %v546, %v548
        %554 = vst [vmem:[%s242] sm:$0xff] %v552
        %s555 = sand.u32 %s153, 1
        %s556 = scalar_lea.sflag [#allocation3], %s555
        %s557 = sand.u32 %s153, 1
        %s558 = smul.addr %s557, 8
        %s559 = scalar_lea.vmem [#allocation2], %s558
        // Predicated region
        $region41: #{tpu_custom_call.1} parent=39 // pred_check
          %p560 = pneg %p163
        $region42: #{tpu_custom_call.1} parent=39 // pred_check_branch
          %562 = sbr.rel (%p560) target = $region44
        $region43: #{tpu_custom_call.1} parent=39 // pred_region
          %s563 = smul.u32 2, %s24
          %s565 = ssub.s32 128, 128
          %566 = vsyncadd %s556, %s565
          %s567 = smul.addr %s23, 2
          %s568 = sadd.s32 %s563, %s567
          %s569 = smul.addr %s568, 64
          %s570 = scalar_lea.hbm %s5, %s569
          %s572 = sshll.u32 %s559, 4
          %s573 = int_to_ptr.vmem [resolvable:$true] %s572
          %575 = dma.vmem_to_hbm [thread:$0]  %s573, 128, %s570, %s556
        $region44: #{tpu_custom_call.1} parent=39 // pred_fallthru
          _
      $region40: #{tpu_custom_call.1} parent=5 // pred_fallthru
        _
      %p576 = scmp.le.s32.totalorder 2, %s14
      // Predicated region
      $region45: #{tpu_custom_call.1} parent=5 // pred_check
        %p577 = pneg %p576
      $region46: #{tpu_custom_call.1} parent=5 // pred_check_branch
        %579 = sbr.rel (%p577) target = $region48
      $region47: #{tpu_custom_call.1} parent=5 // pred_region
        %s580 = ssub.s32 %s14, 2
        // Predicated region
        $region49: #{tpu_custom_call.1} parent=47 // pred_check
          %p581 = pneg %p169
        $region50: #{tpu_custom_call.1} parent=47 // pred_check_branch
          %583 = sbr.rel (%p581) target = $region52
        $region51: #{tpu_custom_call.1} parent=47 // pred_region
          %s584 = sand.u32 %s154, 1
          %s585 = scalar_lea.sflag [#allocation3], %s584
          %s586 = sand.u32 %s154, 1
          %s587 = smul.addr %s586, 8
          %s588 = scalar_lea.vmem [#allocation2], %s587
          %589 = dma.done %s585, 128
        $region52: #{tpu_custom_call.1} parent=47 // pred_fallthru
          _
      $region48: #{tpu_custom_call.1} parent=5 // pred_fallthru
        _
    $region6: #{tpu_custom_call.1} parent=1 // loop_footer
      %s18 = sadd.s32 1, %s14
    $region7: #{tpu_custom_call.1} parent=1 // loop_footer_branch
      %13 = sbr.rel target = $region3
    $region8: #{tpu_custom_call.1} parent=1 // loop_exit
      _
    %590 = vsyncpa [#allocation3], 1
    %s591 = scalar_lea.sflag [#allocation3], 1
    %592 = vsyncpa %s591, 1

</llo_original>
